<compile_context>
chip_gen: v7x
topology: tpu7x:2x2x1
jax: 0.10.0
libtpu: 0.0.40
codegen_flags: <defaults>
</compile_context>

<pallas_src>
import functools

import jax
import jax.numpy as jnp
from jax import lax
from jax.experimental import pallas as pl
from jax.experimental.pallas import tpu as pltpu


def _round_up(x, m):
    return ((x + m - 1) // m) * m


def _attention_kernel(q_ref, k_ref, wk_ref, bk_ref, *refs,
                      causal, scale, tq, tk, sk_valid, has_pad, with_weights):
    # q_ref  : (1, TQ, Dk)   Dk = base_dim + prefer_dim
    # k_ref  : (1, TK, Db)   Db = base_dim   (v == k)
    # wk_ref : (Dk, Db)      torch-layout Linear weight (out, in)
    # bk_ref : (1, Dk)
    # outputs: out (1,TQ,Db) resident across ki; optional aw (1,TQ,TK)
    # scratch: qp (TQ,Db), qb (TQ,1), m (TQ,1), l (TQ,1), acc (TQ,Db)  all f32
    if with_weights:
        out_ref, aw_ref, qp_ref, qb_ref, m_ref, l_ref, acc_ref = refs
    else:
        out_ref, qp_ref, qb_ref, m_ref, l_ref, acc_ref = refs
        aw_ref = None

    qi = pl.program_id(1)
    ki = pl.program_id(2)
    nk = pl.num_programs(2)

    @pl.when(ki == 0)
    def _init():
        # Distributive identity: q @ (kv @ W^T + b)^T == (q @ W) @ kv^T + (q.b)
        # -> project q once per q tile instead of projecting k every step.
        q = q_ref[0]                                               # (TQ, Dk)
        qp_ref[...] = jnp.dot(q, wk_ref[...],
                              preferred_element_type=jnp.float32)  # (TQ, Db)
        qb_ref[...] = jnp.sum(q * bk_ref[...], axis=-1, keepdims=True)
        m_ref[...] = jnp.full_like(m_ref, -jnp.inf)
        l_ref[...] = jnp.zeros_like(l_ref)
        acc_ref[...] = jnp.zeros_like(acc_ref)

    kv = k_ref[0]                                                  # (TK, Db)

    # Raw (unscaled, unmasked) scores for this tile; contract last dims so no
    # kv transpose is materialized.
    s_raw = lax.dot_general(qp_ref[...], kv, (((1,), (1,)), ((), ())),
                            preferred_element_type=jnp.float32) + qb_ref[...]
    if with_weights:
        aw_ref[0] = s_raw.astype(aw_ref.dtype)

    kv_bf16 = kv.astype(jnp.bfloat16)   # PV matmul operand (cast once per step)

    def _accumulate(apply_mask):
        s = s_raw * scale
        if apply_mask:
            col = ki * tk + lax.broadcasted_iota(jnp.int32, s.shape, 1)
            if causal:
                row = qi * tq + lax.broadcasted_iota(jnp.int32, s.shape, 0)
                s = jnp.where(col > row, -jnp.inf, s)
            if has_pad:
                s = jnp.where(col >= sk_valid, -jnp.inf, s)

        m_prev = m_ref[...]
        m_new = jnp.maximum(m_prev, jnp.max(s, axis=-1, keepdims=True))
        if apply_mask:
            # Guard exp(-inf - -inf) for rows with no unmasked column so far.
            alpha = jnp.where(m_new == -jnp.inf, 0.0, jnp.exp(m_prev - m_new))
            p = jnp.where(s == -jnp.inf, 0.0, jnp.exp(s - m_new))
        else:
            alpha = jnp.exp(m_prev - m_new)
            p = jnp.exp(s - m_new)

        l_ref[...] = alpha * l_ref[...] + jnp.sum(p, axis=-1, keepdims=True)
        # bf16 operands for the PV matmul (p in [0,1]); f32 accumulation.
        acc_ref[...] = alpha * acc_ref[...] + jnp.dot(
            p.astype(jnp.bfloat16), kv_bf16, preferred_element_type=jnp.float32)
        m_ref[...] = m_new

    masked = functools.partial(_accumulate, True)
    clean = functools.partial(_accumulate, False)

    needs_mask = None
    if causal:
        # Tile contains at least one (row, col) with col > row.
        needs_mask = ki * tk + (tk - 1) > qi * tq
    if has_pad:
        pad_hit = (ki + 1) * tk > sk_valid
        needs_mask = pad_hit if needs_mask is None else jnp.logical_or(needs_mask, pad_hit)

    if causal:
        # Fully-above-diagonal tiles contribute nothing to the softmax: skip
        # the exp / PV matmul work (aw was still written above).
        # TODO(synk): for the return_weights=False causal path these tiles could
        # be skipped entirely via a scalar-prefetched per-qi k-tile start index.
        contributes = ki * tk < (qi + 1) * tq
        pl.when(jnp.logical_and(contributes, needs_mask))(masked)
        pl.when(jnp.logical_and(contributes, jnp.logical_not(needs_mask)))(clean)
    elif needs_mask is not None:
        pl.when(needs_mask)(masked)
        pl.when(jnp.logical_not(needs_mask))(clean)
    else:
        clean()

    @pl.when(ki == nk - 1)
    def _finalize():
        inv_l = pl.reciprocal(l_ref[...], approx=True)   # EUP slot, ~free
        out_ref[0] = (acc_ref[...] * inv_l).astype(out_ref.dtype)


def attention_forward(q, k, wk_weight, wk_bias, *, causal=False,
                      return_weights=True, tq_target=512, tk_target=1024):
    """q: (B, Sq, Dk), k: (B, Sk, Db), wk_weight: (Dk, Db) torch layout, wk_bias: (Dk,)."""
    B, Sq, Dk = q.shape
    Bk, Sk, Db = k.shape
    assert Bk == B
    assert wk_weight.shape == (Dk, Db)
    assert wk_bias.shape == (Dk,)
    assert tq_target % 8 == 0 and tk_target % 128 == 0
    if causal:
        # The reference builds a (seq_len, seq_len) mask from q's length.
        assert Sq == Sk, "causal path assumes Sq == Sk (same as the PyTorch reference)"

    # TQ sublane-aligned (8); TK lane-aligned (128) so the aw writeback is
    # always lane-dense (padded k columns are masked inside the kernel).
    TQ = min(tq_target, _round_up(Sq, 8))
    TK = min(tk_target, _round_up(Sk, 128))
    # v7x megacore: keep at least 2 steps on the parallel (b, qi) axes.
    while B * ((Sq + TQ - 1) // TQ) < 2 and TQ > 8:
        TQ = max(8, _round_up(TQ // 2, 8))

    Sq_pad = _round_up(Sq, TQ)
    Sk_pad = _round_up(Sk, TK)
    has_pad = Sk_pad != Sk

    if Sq_pad != Sq:
        q = jnp.pad(q, ((0, 0), (0, Sq_pad - Sq), (0, 0)))
    if has_pad:
        k = jnp.pad(k, ((0, 0), (0, Sk_pad - Sk), (0, 0)))

    bk = wk_bias.reshape(1, Dk)
    scale = float(Dk) ** -0.5
    grid = (B, Sq_pad // TQ, Sk_pad // TK)

    kernel = functools.partial(_attention_kernel, causal=causal, scale=scale,
                               tq=TQ, tk=TK, sk_valid=Sk, has_pad=has_pad,
                               with_weights=return_weights)

    out_shapes = [jax.ShapeDtypeStruct((B, Sq_pad, Db), q.dtype)]   # attn_output
    out_specs = [pl.BlockSpec((1, TQ, Db), lambda b, qi, ki: (b, qi, 0))]
    if return_weights:
        out_shapes.append(jax.ShapeDtypeStruct((B, Sq_pad, Sk_pad), q.dtype))
        out_specs.append(pl.BlockSpec((1, TQ, TK), lambda b, qi, ki: (b, qi, ki)))

    # Explicit VMEM budget (double-buffered blocks + lane-padded scratch),
    # capped so it also fits v7x's 64 MiB per-TC VMEM.
    f32b = 4
    est = 2 * f32b * (TQ * Dk + TK * Db + TQ * Db
                      + (TQ * TK if return_weights else 0) + Dk * Db + Dk)
    est += f32b * TQ * (2 * Db + 3 * 128)
    vmem_limit = int(min(64 * 2**20, max(32 * 2**20, 2 * est)))

    grid_spec = pltpu.PrefetchScalarGridSpec(
        num_scalar_prefetch=0,
        grid=grid,
        in_specs=[
            pl.BlockSpec((1, TQ, Dk), lambda b, qi, ki: (b, qi, 0)),
            pl.BlockSpec((1, TK, Db), lambda b, qi, ki: (b, ki, 0)),
            # constant index maps -> weight/bias stay VMEM-resident
            pl.BlockSpec((Dk, Db), lambda b, qi, ki: (0, 0)),
            pl.BlockSpec((1, Dk), lambda b, qi, ki: (0, 0)),
        ],
        out_specs=out_specs,
        scratch_shapes=[
            pltpu.VMEM((TQ, Db), jnp.float32),   # q @ W          (per q tile)
            pltpu.VMEM((TQ, 1), jnp.float32),    # q . bias       (per q tile)
            pltpu.VMEM((TQ, 1), jnp.float32),    # running max m
            pltpu.VMEM((TQ, 1), jnp.float32),    # running denom l
            pltpu.VMEM((TQ, Db), jnp.float32),   # running numerator acc
        ],
    )

    results = pl.pallas_call(
        kernel,
        out_shape=out_shapes,
        grid_spec=grid_spec,
        compiler_params=pltpu.CompilerParams(
            dimension_semantics=("parallel", "parallel", "arbitrary"),
            vmem_limit_bytes=vmem_limit),
    )(q, k, wk_weight, bk)

    if return_weights:
        out, aw = results
        return out[:, :Sq, :], aw[:, :Sq, :Sk]
    (out,) = results
    return out[:, :Sq, :]


def _reference(q, k, wk_weight, wk_bias, causal=False):
    hp = lax.Precision.HIGHEST
    key = jnp.einsum("bsd,od->bso", k, wk_weight, precision=hp) + wk_bias
    aw = jnp.einsum("bqd,bkd->bqk", q, key, precision=hp)
    s = aw * (1.0 / key.shape[-1] ** 0.5)
    if causal:
        sq = q.shape[1]
        mask = jnp.triu(jnp.full((sq, sq), -jnp.inf, dtype=q.dtype), k=1)
        s = s + mask
    p = jax.nn.softmax(s, axis=-1)
    out = jnp.einsum("bqk,bkd->bqd", p, k, precision=hp)
    return out, aw


if __name__ == "__main__":
    # args: base_dim=32, prefer_dim=32 -> q feature dim = 64
    base_dim, prefer_dim = 32, 32
    Dk = base_dim + prefer_dim
    B, S = 2, 8

    key0 = jax.random.PRNGKey(0)
    kq, kk, kw, kb = jax.random.split(key0, 4)
    q = jax.random.normal(kq, (B, S, Dk), dtype=jnp.float32)
    k = jax.random.normal(kk, (B, S, base_dim), dtype=jnp.float32)
    # nn.Linear(base_dim, base_dim + prefer_dim): weight (Dk, base_dim), bias (Dk,)
    wk_weight = jax.random.normal(kw, (Dk, base_dim), dtype=jnp.float32) * 0.05
    wk_bias = jax.random.normal(kb, (Dk,), dtype=jnp.float32) * 0.05
    # TODO(synk): w_v = nn.Linear(base_dim, base_dim) is defined in __init__ but
    # never used in forward (v = k), so it is intentionally omitted here.

    # aw is pure f32-MXU math; attn_output uses bf16 PV operands + approx
    # reciprocal for the softmax denominator -> looser tolerance.
    for causal in (False, True):
        out, aw = attention_forward(q, k, wk_weight, wk_bias, causal=causal)
        jax.block_until_ready((out, aw))
        ref_out, ref_aw = _reference(q, k, wk_weight, wk_bias, causal=causal)
        assert out.shape == ref_out.shape and aw.shape == ref_aw.shape
        assert jnp.allclose(aw, ref_aw, atol=1e-3, rtol=1e-3)
        assert jnp.allclose(out, ref_out, atol=2e-2, rtol=2e-2)

    # Fast path that drops the attn_weights HBM stream.
    out_nw = attention_forward(q, k, wk_weight, wk_bias, causal=False,
                               return_weights=False)
    jax.block_until_ready(out_nw)
    assert jnp.allclose(out_nw, _reference(q, k, wk_weight, wk_bias, False)[0],
                        atol=2e-2, rtol=2e-2)

    # Non-aligned multi-tile case: exercises Sq/Sk padding + masking, the online
    # softmax across k tiles, and the causal skip / clean-tile / masked-tile branches.
    S2 = 132
    kq2, kk2 = jax.random.split(jax.random.PRNGKey(1), 2)
    q2 = jax.random.normal(kq2, (B, S2, Dk), dtype=jnp.float32)
    k2 = jax.random.normal(kk2, (B, S2, base_dim), dtype=jnp.float32)
    for causal in (False, True):
        out2, aw2 = attention_forward(q2, k2, wk_weight, wk_bias, causal=causal,
                                      tq_target=64, tk_target=128)
        jax.block_until_ready((out2, aw2))
        ref_out2, ref_aw2 = _reference(q2, k2, wk_weight, wk_bias, causal=causal)
        assert jnp.allclose(aw2, ref_aw2, atol=1e-3, rtol=1e-3)
        assert jnp.allclose(out2, ref_out2, atol=2e-2, rtol=2e-2)

    print("KERNEL_OK")
</pallas_src>

<mosaic_0001>
module attributes {stable_mosaic.version = 11 : i64} {
  func.func @_attention_kernel(%arg0: i32, %arg1: i32, %arg2: i32, %arg3: memref<1x8x64xf32, #tpu.memory_space<vmem>>, %arg4: memref<1x128x32xf32, #tpu.memory_space<vmem>>, %arg5: memref<64x32xf32, #tpu.memory_space<vmem>>, %arg6: memref<1x64xf32, #tpu.memory_space<vmem>>, %arg7: memref<1x8x32xf32, #tpu.memory_space<vmem>>, %arg8: memref<1x8x128xf32, #tpu.memory_space<vmem>>, %arg9: memref<8x32xf32, #tpu.memory_space<vmem>>, %arg10: memref<8x1xf32, #tpu.memory_space<vmem>>, %arg11: memref<8x1xf32, #tpu.memory_space<vmem>>, %arg12: memref<8x1xf32, #tpu.memory_space<vmem>>, %arg13: memref<8x32xf32, #tpu.memory_space<vmem>>) attributes {dimension_semantics = [#tpu.dimension_semantics<parallel>, #tpu.dimension_semantics<parallel>, #tpu.dimension_semantics<arbitrary>], iteration_bounds = array<i64: 2, 1, 1>, scalar_prefetch = 0 : i64, scratch_operands = 5 : i64, tpu.core_type = #tpu.core_type<tc>, window_params = [{transform_indices = @transform_0, window_bounds = array<i64: 1, 8, 64>}, {transform_indices = @transform_1, window_bounds = array<i64: 1, 128, 32>}, {pipeline_mode = #tpu.pipeline_mode<synchronous>, transform_indices = @transform_2, window_bounds = array<i64: 64, 32>}, {pipeline_mode = #tpu.pipeline_mode<synchronous>, transform_indices = @transform_3, window_bounds = array<i64: 1, 64>}, {transform_indices = @transform_4, window_bounds = array<i64: 1, 8, 32>}, {transform_indices = @transform_5, window_bounds = array<i64: 1, 8, 128>}]} {
    %c0_i32 = arith.constant 0 : i32
    %0 = arith.cmpi eq, %arg2, %c0_i32 : i32
    %1 = arith.extui %0 : i1 to i32
    %c0_i32_0 = arith.constant 0 : i32
    %2 = arith.cmpi ne, %1, %c0_i32_0 : i32
    scf.if %2 {
      %c0_14 = arith.constant 0 : index
      %c0_15 = arith.constant 0 : index
      %c0_16 = arith.constant 0 : index
      %25 = vector.load %arg3[%c0_14, %c0_15, %c0_16] : memref<1x8x64xf32, #tpu.memory_space<vmem>>, vector<1x8x64xf32>
      %26 = vector.shape_cast %25 : vector<1x8x64xf32> to vector<8x64xf32>
      %c0_17 = arith.constant 0 : index
      %c0_18 = arith.constant 0 : index
      %27 = vector.load %arg5[%c0_17, %c0_18] : memref<64x32xf32, #tpu.memory_space<vmem>>, vector<64x32xf32>
      %cst_19 = arith.constant dense<0.000000e+00> : vector<8x32xf32>
      %28 = tpu.matmul %26, %27, %cst_19 {dimension_numbers = #tpu.dot_dimension_numbers<[1], [0], [0], [1], [0, 0, 1, 1], [], []>} : vector<8x64xf32>, vector<64x32xf32>, vector<8x32xf32> -> vector<8x32xf32>
      %c0_20 = arith.constant 0 : index
      %c0_21 = arith.constant 0 : index
      %29 = vector.load %arg9[%c0_20, %c0_21] : memref<8x32xf32, #tpu.memory_space<vmem>>, vector<8x32xf32>
      tpu.vector_store %arg9[%c0_20, %c0_21], %28 {strides = array<i32>} : memref<8x32xf32, #tpu.memory_space<vmem>>, vector<8x32xf32>,
      %c0_22 = arith.constant 0 : index
      %c0_23 = arith.constant 0 : index
      %30 = vector.load %arg6[%c0_22, %c0_23] : memref<1x64xf32, #tpu.memory_space<vmem>>, vector<1x64xf32>
      %31 = vector.broadcast %30 : vector<1x64xf32> to vector<8x64xf32>
      %32 = arith.mulf %26, %31 : vector<8x64xf32>
      %cst_24 = arith.constant dense<0.000000e+00> : vector<8xf32>
      %33 = vector.multi_reduction <add>, %32, %cst_24 [1] : vector<8x64xf32> to vector<8xf32>
      %34 = vector.shape_cast %33 : vector<8xf32> to vector<8x1xf32>
      %c0_25 = arith.constant 0 : index
      %c0_26 = arith.constant 0 : index
      %35 = vector.load %arg10[%c0_25, %c0_26] : memref<8x1xf32, #tpu.memory_space<vmem>>, vector<8x1xf32>
      tpu.vector_store %arg10[%c0_25, %c0_26], %34 {strides = array<i32>} : memref<8x1xf32, #tpu.memory_space<vmem>>, vector<8x1xf32>,
      %cst_27 = arith.constant 0xFF800000 : f32
      %36 = vector.broadcast %cst_27 : f32 to vector<8x1xf32>
      %c0_28 = arith.constant 0 : index
      %c0_29 = arith.constant 0 : index
      %37 = vector.load %arg11[%c0_28, %c0_29] : memref<8x1xf32, #tpu.memory_space<vmem>>, vector<8x1xf32>
      tpu.vector_store %arg11[%c0_28, %c0_29], %36 {strides = array<i32>} : memref<8x1xf32, #tpu.memory_space<vmem>>, vector<8x1xf32>,
      %cst_30 = arith.constant 0.000000e+00 : f32
      %38 = vector.broadcast %cst_30 : f32 to vector<8x1xf32>
      %c0_31 = arith.constant 0 : index
      %c0_32 = arith.constant 0 : index
      %39 = vector.load %arg12[%c0_31, %c0_32] : memref<8x1xf32, #tpu.memory_space<vmem>>, vector<8x1xf32>
      tpu.vector_store %arg12[%c0_31, %c0_32], %38 {strides = array<i32>} : memref<8x1xf32, #tpu.memory_space<vmem>>, vector<8x1xf32>,
      %cst_33 = arith.constant 0.000000e+00 : f32
      %40 = vector.broadcast %cst_33 : f32 to vector<8x32xf32>
      %c0_34 = arith.constant 0 : index
      %c0_35 = arith.constant 0 : index
      %41 = vector.load %arg13[%c0_34, %c0_35] : memref<8x32xf32, #tpu.memory_space<vmem>>, vector<8x32xf32>
      tpu.vector_store %arg13[%c0_34, %c0_35], %40 {strides = array<i32>} : memref<8x32xf32, #tpu.memory_space<vmem>>, vector<8x32xf32>,
    } else {
    }
    %c0 = arith.constant 0 : index
    %c0_1 = arith.constant 0 : index
    %c0_2 = arith.constant 0 : index
    %3 = vector.load %arg4[%c0, %c0_1, %c0_2] : memref<1x128x32xf32, #tpu.memory_space<vmem>>, vector<1x128x32xf32>
    %4 = vector.shape_cast %3 : vector<1x128x32xf32> to vector<128x32xf32>
    %c0_3 = arith.constant 0 : index
    %c0_4 = arith.constant 0 : index
    %5 = vector.load %arg9[%c0_3, %c0_4] : memref<8x32xf32, #tpu.memory_space<vmem>>, vector<8x32xf32>
    %cst = arith.constant dense<0.000000e+00> : vector<8x128xf32>
    %6 = tpu.matmul %5, %4, %cst {dimension_numbers = #tpu.dot_dimension_numbers<[1], [1], [0], [0], [0, 0, 1, 0], [], []>} : vector<8x32xf32>, vector<128x32xf32>, vector<8x128xf32> -> vector<8x128xf32>
    %c0_5 = arith.constant 0 : index
    %c0_6 = arith.constant 0 : index
    %7 = vector.load %arg10[%c0_5, %c0_6] : memref<8x1xf32, #tpu.memory_space<vmem>>, vector<8x1xf32>
    %8 = vector.broadcast %7 : vector<8x1xf32> to vector<8x128xf32>
    %9 = arith.addf %6, %8 : vector<8x128xf32>
    %c0_7 = arith.constant 0 : index
    %c0_8 = arith.constant 0 : index
    %c0_9 = arith.constant 0 : index
    %10 = vector.load %arg8[%c0_7, %c0_8, %c0_9] : memref<1x8x128xf32, #tpu.memory_space<vmem>>, vector<1x8x128xf32>
    %11 = vector.shape_cast %10 : vector<1x8x128xf32> to vector<8x128xf32>
    %12 = vector.shape_cast %9 : vector<8x128xf32> to vector<1x8x128xf32>
    tpu.vector_store %arg8[%c0_7, %c0_8, %c0_9], %12 {strides = array<i32>} : memref<1x8x128xf32, #tpu.memory_space<vmem>>, vector<1x8x128xf32>,
    %13 = arith.truncf %4 : vector<128x32xf32> to vector<128x32xbf16>
    %c1_i32 = arith.constant 1 : i32
    %14 = arith.addi %arg2, %c1_i32 : i32
    %c128_i32 = arith.constant 128 : i32
    %15 = arith.muli %14, %c128_i32 : i32
    %c8_i32 = arith.constant 8 : i32
    %16 = arith.cmpi sgt, %15, %c8_i32 : i32
    %17 = arith.extui %16 : i1 to i32
    %c0_i32_10 = arith.constant 0 : i32
    %18 = arith.cmpi ne, %17, %c0_i32_10 : i32
    scf.if %18 {
      %cst_14 = arith.constant 1.250000e-01 : f32
      %25 = vector.broadcast %cst_14 : f32 to vector<8x128xf32>
      %26 = arith.mulf %9, %25 : vector<8x128xf32>
      %c128_i32_15 = arith.constant 128 : i32
      %27 = arith.muli %arg2, %c128_i32_15 : i32
      %28 = tpu.iota {dimensions = array<i32: 1>} : vector<8x128xi32>
      %29 = vector.broadcast %27 : i32 to vector<8x128xi32>
      %30 = arith.addi %29, %28 : vector<8x128xi32>
      %c8_i32_16 = arith.constant 8 : i32
      %31 = vector.broadcast %c8_i32_16 : i32 to vector<8x128xi32>
      %32 = arith.cmpi sge, %30, %31 : vector<8x128xi32>
      %cst_17 = arith.constant 0xFF800000 : f32
      %33 = vector.broadcast %cst_17 : f32 to vector<8x128xf32>
      %34 = arith.select %32, %33, %26 : vector<8x128xi1>, vector<8x128xf32>
      %c0_18 = arith.constant 0 : index
      %c0_19 = arith.constant 0 : index
      %35 = vector.load %arg11[%c0_18, %c0_19] : memref<8x1xf32, #tpu.memory_space<vmem>>, vector<8x1xf32>
      %cst_20 = arith.constant dense<0xFF800000> : vector<8xf32>
      %36 = vector.multi_reduction <maximumf>, %34, %cst_20 [1] : vector<8x128xf32> to vector<8xf32>
      %37 = vector.shape_cast %36 : vector<8xf32> to vector<8x1xf32>
      %38 = arith.maximumf %35, %37 : vector<8x1xf32>
      %cst_21 = arith.constant 0xFF800000 : f32
      %39 = vector.broadcast %cst_21 : f32 to vector<8x1xf32>
      %40 = arith.cmpf oeq, %38, %39 : vector<8x1xf32>
      %41 = arith.subf %35, %38 : vector<8x1xf32>
      %42 = math.exp %41 : vector<8x1xf32>
      %cst_22 = arith.constant 0.000000e+00 : f32
      %43 = vector.broadcast %cst_22 : f32 to vector<8x1xf32>
      %44 = arith.select %40, %43, %42 : vector<8x1xi1>, vector<8x1xf32>
      %cst_23 = arith.constant 0xFF800000 : f32
      %45 = vector.broadcast %cst_23 : f32 to vector<8x128xf32>
      %46 = arith.cmpf oeq, %34, %45 : vector<8x128xf32>
      %47 = vector.broadcast %38 : vector<8x1xf32> to vector<8x128xf32>
      %48 = arith.subf %34, %47 : vector<8x128xf32>
      %49 = math.exp %48 : vector<8x128xf32>
      %cst_24 = arith.constant 0.000000e+00 : f32
      %50 = vector.broadcast %cst_24 : f32 to vector<8x128xf32>
      %51 = arith.select %46, %50, %49 : vector<8x128xi1>, vector<8x128xf32>
      %c0_25 = arith.constant 0 : index
      %c0_26 = arith.constant 0 : index
      %52 = vector.load %arg12[%c0_25, %c0_26] : memref<8x1xf32, #tpu.memory_space<vmem>>, vector<8x1xf32>
      %53 = arith.mulf %44, %52 : vector<8x1xf32>
      %cst_27 = arith.constant dense<0.000000e+00> : vector<8xf32>
      %54 = vector.multi_reduction <add>, %51, %cst_27 [1] : vector<8x128xf32> to vector<8xf32>
      %55 = vector.shape_cast %54 : vector<8xf32> to vector<8x1xf32>
      %56 = arith.addf %53, %55 : vector<8x1xf32>
      %c0_28 = arith.constant 0 : index
      %c0_29 = arith.constant 0 : index
      %57 = vector.load %arg12[%c0_28, %c0_29] : memref<8x1xf32, #tpu.memory_space<vmem>>, vector<8x1xf32>
      tpu.vector_store %arg12[%c0_28, %c0_29], %56 {strides = array<i32>} : memref<8x1xf32, #tpu.memory_space<vmem>>, vector<8x1xf32>,
      %c0_30 = arith.constant 0 : index
      %c0_31 = arith.constant 0 : index
      %58 = vector.load %arg13[%c0_30, %c0_31] : memref<8x32xf32, #tpu.memory_space<vmem>>, vector<8x32xf32>
      %59 = vector.broadcast %44 : vector<8x1xf32> to vector<8x32xf32>
      %60 = arith.mulf %59, %58 : vector<8x32xf32>
      %61 = arith.truncf %51 : vector<8x128xf32> to vector<8x128xbf16>
      %cst_32 = arith.constant dense<0.000000e+00> : vector<8x32xf32>
      %62 = tpu.matmul %61, %13, %cst_32 {dimension_numbers = #tpu.dot_dimension_numbers<[1], [0], [0], [1], [0, 0, 1, 1], [], []>} : vector<8x128xbf16>, vector<128x32xbf16>, vector<8x32xf32> -> vector<8x32xf32>
      %63 = arith.addf %60, %62 : vector<8x32xf32>
      %c0_33 = arith.constant 0 : index
      %c0_34 = arith.constant 0 : index
      %64 = vector.load %arg13[%c0_33, %c0_34] : memref<8x32xf32, #tpu.memory_space<vmem>>, vector<8x32xf32>
      tpu.vector_store %arg13[%c0_33, %c0_34], %63 {strides = array<i32>} : memref<8x32xf32, #tpu.memory_space<vmem>>, vector<8x32xf32>,
      %c0_35 = arith.constant 0 : index
      %c0_36 = arith.constant 0 : index
      %65 = vector.load %arg11[%c0_35, %c0_36] : memref<8x1xf32, #tpu.memory_space<vmem>>, vector<8x1xf32>
      tpu.vector_store %arg11[%c0_35, %c0_36], %38 {strides = array<i32>} : memref<8x1xf32, #tpu.memory_space<vmem>>, vector<8x1xf32>,
    } else {
    }
    %true = arith.constant true
    %19 = arith.xori %16, %true : i1
    %20 = arith.extui %19 : i1 to i32
    %c0_i32_11 = arith.constant 0 : i32
    %21 = arith.cmpi ne, %20, %c0_i32_11 : i32
    scf.if %21 {
      %cst_14 = arith.constant 1.250000e-01 : f32
      %25 = vector.broadcast %cst_14 : f32 to vector<8x128xf32>
      %26 = arith.mulf %9, %25 : vector<8x128xf32>
      %c0_15 = arith.constant 0 : index
      %c0_16 = arith.constant 0 : index
      %27 = vector.load %arg11[%c0_15, %c0_16] : memref<8x1xf32, #tpu.memory_space<vmem>>, vector<8x1xf32>
      %cst_17 = arith.constant dense<0xFF800000> : vector<8xf32>
      %28 = vector.multi_reduction <maximumf>, %26, %cst_17 [1] : vector<8x128xf32> to vector<8xf32>
      %29 = vector.shape_cast %28 : vector<8xf32> to vector<8x1xf32>
      %30 = arith.maximumf %27, %29 : vector<8x1xf32>
      %31 = arith.subf %27, %30 : vector<8x1xf32>
      %32 = math.exp %31 : vector<8x1xf32>
      %33 = vector.broadcast %30 : vector<8x1xf32> to vector<8x128xf32>
      %34 = arith.subf %26, %33 : vector<8x128xf32>
      %35 = math.exp %34 : vector<8x128xf32>
      %c0_18 = arith.constant 0 : index
      %c0_19 = arith.constant 0 : index
      %36 = vector.load %arg12[%c0_18, %c0_19] : memref<8x1xf32, #tpu.memory_space<vmem>>, vector<8x1xf32>
      %37 = arith.mulf %32, %36 : vector<8x1xf32>
      %cst_20 = arith.constant dense<0.000000e+00> : vector<8xf32>
      %38 = vector.multi_reduction <add>, %35, %cst_20 [1] : vector<8x128xf32> to vector<8xf32>
      %39 = vector.shape_cast %38 : vector<8xf32> to vector<8x1xf32>
      %40 = arith.addf %37, %39 : vector<8x1xf32>
      %c0_21 = arith.constant 0 : index
      %c0_22 = arith.constant 0 : index
      %41 = vector.load %arg12[%c0_21, %c0_22] : memref<8x1xf32, #tpu.memory_space<vmem>>, vector<8x1xf32>
      tpu.vector_store %arg12[%c0_21, %c0_22], %40 {strides = array<i32>} : memref<8x1xf32, #tpu.memory_space<vmem>>, vector<8x1xf32>,
      %c0_23 = arith.constant 0 : index
      %c0_24 = arith.constant 0 : index
      %42 = vector.load %arg13[%c0_23, %c0_24] : memref<8x32xf32, #tpu.memory_space<vmem>>, vector<8x32xf32>
      %43 = vector.broadcast %32 : vector<8x1xf32> to vector<8x32xf32>
      %44 = arith.mulf %43, %42 : vector<8x32xf32>
      %45 = arith.truncf %35 : vector<8x128xf32> to vector<8x128xbf16>
      %cst_25 = arith.constant dense<0.000000e+00> : vector<8x32xf32>
      %46 = tpu.matmul %45, %13, %cst_25 {dimension_numbers = #tpu.dot_dimension_numbers<[1], [0], [0], [1], [0, 0, 1, 1], [], []>} : vector<8x128xbf16>, vector<128x32xbf16>, vector<8x32xf32> -> vector<8x32xf32>
      %47 = arith.addf %44, %46 : vector<8x32xf32>
      %c0_26 = arith.constant 0 : index
      %c0_27 = arith.constant 0 : index
      %48 = vector.load %arg13[%c0_26, %c0_27] : memref<8x32xf32, #tpu.memory_space<vmem>>, vector<8x32xf32>
      tpu.vector_store %arg13[%c0_26, %c0_27], %47 {strides = array<i32>} : memref<8x32xf32, #tpu.memory_space<vmem>>, vector<8x32xf32>,
      %c0_28 = arith.constant 0 : index
      %c0_29 = arith.constant 0 : index
      %49 = vector.load %arg11[%c0_28, %c0_29] : memref<8x1xf32, #tpu.memory_space<vmem>>, vector<8x1xf32>
      tpu.vector_store %arg11[%c0_28, %c0_29], %30 {strides = array<i32>} : memref<8x1xf32, #tpu.memory_space<vmem>>, vector<8x1xf32>,
    } else {
    }
    %c0_i32_12 = arith.constant 0 : i32
    %22 = arith.cmpi eq, %arg2, %c0_i32_12 : i32
    %23 = arith.extui %22 : i1 to i32
    %c0_i32_13 = arith.constant 0 : i32
    %24 = arith.cmpi ne, %23, %c0_i32_13 : i32
    scf.if %24 {
      %c0_14 = arith.constant 0 : index
      %c0_15 = arith.constant 0 : index
      %25 = vector.load %arg12[%c0_14, %c0_15] : memref<8x1xf32, #tpu.memory_space<vmem>>, vector<8x1xf32>
      %26 = tpu.reciprocal %25 {approx = true} : vector<8x1xf32> -> vector<8x1xf32>
      %c0_16 = arith.constant 0 : index
      %c0_17 = arith.constant 0 : index
      %27 = vector.load %arg13[%c0_16, %c0_17] : memref<8x32xf32, #tpu.memory_space<vmem>>, vector<8x32xf32>
      %28 = vector.broadcast %26 : vector<8x1xf32> to vector<8x32xf32>
      %29 = arith.mulf %27, %28 : vector<8x32xf32>
      %c0_18 = arith.constant 0 : index
      %c0_19 = arith.constant 0 : index
      %c0_20 = arith.constant 0 : index
      %30 = vector.load %arg7[%c0_18, %c0_19, %c0_20] : memref<1x8x32xf32, #tpu.memory_space<vmem>>, vector<1x8x32xf32>
      %31 = vector.shape_cast %30 : vector<1x8x32xf32> to vector<8x32xf32>
      %32 = vector.shape_cast %29 : vector<8x32xf32> to vector<1x8x32xf32>
      tpu.vector_store %arg7[%c0_18, %c0_19, %c0_20], %32 {strides = array<i32>} : memref<1x8x32xf32, #tpu.memory_space<vmem>>, vector<1x8x32xf32>,
    } else {
    }
    return
  }
  func.func @transform_0(%arg0: i32, %arg1: i32, %arg2: i32) -> (i32, i32, i32) {
    %c0_i32 = arith.constant 0 : i32
    %c0_i32_0 = arith.constant 0 : i32
    return %arg0, %arg1, %c0_i32 : i32, i32, i32
  }
  func.func @transform_1(%arg0: i32, %arg1: i32, %arg2: i32) -> (i32, i32, i32) {
    %c0_i32 = arith.constant 0 : i32
    %c0_i32_0 = arith.constant 0 : i32
    return %arg0, %arg2, %c0_i32 : i32, i32, i32
  }
  func.func @transform_2(%arg0: i32, %arg1: i32, %arg2: i32) -> (i32, i32) {
    %c0_i32 = arith.constant 0 : i32
    %c0_i32_0 = arith.constant 0 : i32
    %c0_i32_1 = arith.constant 0 : i32
    return %c0_i32, %c0_i32_0 : i32, i32
  }
  func.func @transform_3(%arg0: i32, %arg1: i32, %arg2: i32) -> (i32, i32) {
    %c0_i32 = arith.constant 0 : i32
    %c0_i32_0 = arith.constant 0 : i32
    %c0_i32_1 = arith.constant 0 : i32
    return %c0_i32, %c0_i32_0 : i32, i32
  }
  func.func @transform_4(%arg0: i32, %arg1: i32, %arg2: i32) -> (i32, i32, i32) {
    %c0_i32 = arith.constant 0 : i32
    %c0_i32_0 = arith.constant 0 : i32
    return %arg0, %arg1, %c0_i32 : i32, i32, i32
  }
  func.func @transform_5(%arg0: i32, %arg1: i32, %arg2: i32) -> (i32, i32, i32) {
    %c0_i32 = arith.constant 0 : i32
    return %arg0, %arg1, %arg2 : i32, i32, i32
  }
}

</mosaic_0001>

<llo_original>
// kernel: tpu_custom_call.1
$region0: #{tpu_custom_call.1}
  #allocation0 [shape = 'u32[]', space=smem, size = 0x4, offset = 0x4, fixed_abs, tag = 'smem constant byte address 0x4 - core index']
  #allocation1 [shape = 'u32[144,128]{1,0:T(1,128)}', space=vmem, size = 0x12000, scoped, tag = 'internal scratch']
  #allocation2 [shape = 'f32[8,32]{1,0:T(8,128)}', space=vmem, size = 0x1000, scoped, tag = 'scratch operand']
  #allocation3 [shape = 'f32[8,1]{1,0:T(8,128)}', space=vmem, size = 0x1000, scoped, tag = 'scratch operand']
  #allocation4 [shape = 'f32[8,1]{1,0:T(8,128)}', space=vmem, size = 0x1000, scoped, tag = 'scratch operand']
  #allocation5 [shape = 'f32[8,1]{1,0:T(8,128)}', space=vmem, size = 0x1000, scoped, tag = 'scratch operand']
  #allocation6 [shape = 'f32[8,32]{1,0:T(8,128)}', space=vmem, size = 0x1000, scoped, tag = 'scratch operand']
  %s0 = inlined_call_operand.vmem [shape: f32[2,8,64], index: 0, kind: input, shape index: {}]
  %s1 = inlined_call_operand.vmem [shape: f32[2,128,32], index: 1, kind: input, shape index: {}]
  %s2 = inlined_call_operand.vmem [shape: f32[64,32], index: 2, kind: input, shape index: {}]
  %s3 = inlined_call_operand.vmem [shape: f32[1,64], index: 3, kind: input, shape index: {}]
  %s4 = inlined_call_operand.hbm [shape: f32[2,8,32], index: 4, kind: output, shape index: {0}]
  %s5 = inlined_call_operand.hbm [shape: f32[2,8,128], index: 5, kind: output, shape index: {1}]
  %6 = xla_tuple %s4, %s5
  %s7 = sld [smem:[#allocation0]]
  $region73: #{tpu_custom_call.1} parent=0
    _
  %s9 = ssub.s32 1, %s7
  %s10 = scalar_select 0, %s9, %s7
  $region1: #{tpu_custom_call.1} parent=0
    #allocation7 [shape = 'u8[8192]{0}', space=vmem, size = 0x2000, scoped, tag = 'output window, operand 0']
    #allocation8 [shape = 's32[2]{0}', space=sflag, size = 0x8, scoped, tag = 'scoped memory for tpu_custom_call.1']
    #allocation9 [shape = 'u8[8192]{0}', space=vmem, size = 0x2000, scoped, tag = 'output window, operand 1']
    #allocation10 [shape = 's32[2]{0}', space=sflag, size = 0x8, scoped, tag = 'scoped memory for tpu_custom_call.1']
    %11 = vsyncpa [#allocation8], 0
    %s12 = scalar_lea.sflag [#allocation8], 1
    %13 = vsyncpa %s12, 0
    %14 = vsyncpa [#allocation10], 0
    %s15 = scalar_lea.sflag [#allocation10], 1
    %16 = vsyncpa %s15, 0
    loop: start=0, step=1, limit=4
    $region2: #{tpu_custom_call.1} parent=1 // loop_pre_header
      _
    $region3: #{tpu_custom_call.1} parent=1 // loop_header
      %s18 = sphi 0, %s22
      %p19 = scmp.ge.s32.totalorder %s18, 4
      %s25 = sphi 0, %s44
      %s26 = sphi 0, %s40
      %s27 = sphi 0, %s36
      %s28 = sphi 0, %s25
      %s29 = sphi 0, %s26
      %s30 = sphi 0, %s27
      %s31 = sphi 0, %s28
      %s32 = sphi 0, %s29
      %s33 = sphi 0, %s30
      %s49 = sphi 0, %s51
      %s52 = sphi 0, %s49
      %s53 = sphi 0, %s52
      %s69 = sphi 0, %s53
      %s77 = sphi 0, %s79
      %s80 = sphi 0, %s77
      %s81 = sphi 0, %s80
      %s97 = sphi 0, %s81
      %s101 = sphi 0, %s101
      %s103 = sphi 0, %s101
      %s104 = sphi 0, %s103
      %s118 = sphi 0, %s104
      %s122 = sphi 0, %s122
      %s124 = sphi 0, %s122
      %s125 = sphi 0, %s124
      %s139 = sphi 0, %s125
      %s147 = sphi 0, %s149
      %s150 = sphi 0, %s147
      %s151 = sphi 0, %s150
      %s167 = sphi 0, %s151
      %s177 = sphi 0, %s179
      %s180 = sphi 0, %s177
      %s181 = sphi 0, %s180
      %s197 = sphi 0, %s181
    $region4: #{tpu_custom_call.1} parent=1 // loop_header_branch
      %21 = sbr.rel (%p19) target = $region8
    $region5: #{tpu_custom_call.1} parent=1 // loop_body
      %s23 = ssub.s32 %s18, 1
      %s24 = ssub.s32 %s18, 2
      %s34 = sadd.s32 1, %s27
      %p35 = scmp.ge.s32.totalorder %s34, 1
      %s36 = scalar_select %p35, 0, %s34
      %s37 = sadd.s32 1, %s26
      %s38 = scalar_select %p35, %s37, %s26
      %p39 = scmp.ge.s32.totalorder %s38, 1
      %s40 = scalar_select %p39, 0, %s38
      %s41 = sadd.s32 1, %s25
      %s42 = scalar_select %p39, %s41, %s25
      %p43 = scmp.ge.s32.totalorder %s42, 2
      %s44 = scalar_select %p43, 0, %s42
      %s45 = ssub.s32 %s25, %s44
      %s46 = ssub.s32 %s26, %s40
      %s47 = sor.u32 %s45, %s46
      %p48 = scmp.eq.s32.totalorder %s47, 0
      %s50 = sadd.s32 %s49, 1
      %s51 = scalar_select %p48, %s49, %s50
      %p54 = pneg %p48
      %p55 = scmp.eq.s32.totalorder %s18, 1
      %p56 = por %p54, %p55
      %p57 = scmp.ne.s32.totalorder %s49, %s52
      %p58 = scmp.eq.s32.totalorder %s18, 0
      %p59 = por %p57, %p58
      %p60 = scmp.ne.s32.totalorder %s49, %s52
      %p61 = scmp.eq.s32.totalorder %s23, 1
      %p62 = por %p60, %p61
      %p63 = scmp.ne.s32.totalorder %s52, %s53
      %p64 = scmp.eq.s32.totalorder %s23, 0
      %p65 = por %p63, %p64
      %p66 = scmp.ne.s32.totalorder %s52, %s53
      %p67 = scmp.eq.s32.totalorder %s24, 1
      %p68 = por %p66, %p67
      %p70 = scmp.ne.s32.totalorder %s53, %s69
      %p71 = scmp.eq.s32.totalorder %s24, 0
      %p72 = por %p70, %p71
      %s73 = ssub.s32 %s25, %s44
      %s74 = ssub.s32 %s27, %s36
      %s75 = sor.u32 %s73, %s74
      %p76 = scmp.eq.s32.totalorder %s75, 0
      %s78 = sadd.s32 %s77, 1
      %s79 = scalar_select %p76, %s77, %s78
      %p82 = pneg %p76
      %p83 = scmp.eq.s32.totalorder %s18, 1
      %p84 = por %p82, %p83
      %p85 = scmp.ne.s32.totalorder %s77, %s80
      %p86 = scmp.eq.s32.totalorder %s18, 0
      %p87 = por %p85, %p86
      %p88 = scmp.ne.s32.totalorder %s77, %s80
      %p89 = scmp.eq.s32.totalorder %s23, 1
      %p90 = por %p88, %p89
      %p91 = scmp.ne.s32.totalorder %s80, %s81
      %p92 = scmp.eq.s32.totalorder %s23, 0
      %p93 = por %p91, %p92
      %p94 = scmp.ne.s32.totalorder %s80, %s81
      %p95 = scmp.eq.s32.totalorder %s24, 1
      %p96 = por %p94, %p95
      %p98 = scmp.ne.s32.totalorder %s81, %s97
      %p99 = scmp.eq.s32.totalorder %s24, 0
      %p100 = por %p98, %p99
      %s102 = sadd.s32 %s101, 1
      %p105 = scmp.eq.s32.totalorder %s18, 1
      %p106 = scmp.ne.s32.totalorder %s101, %s103
      %p107 = scmp.eq.s32.totalorder %s18, 0
      %p108 = por %p106, %p107
      %p109 = scmp.ne.s32.totalorder %s101, %s103
      %p110 = scmp.eq.s32.totalorder %s23, 1
      %p111 = por %p109, %p110
      %p112 = scmp.ne.s32.totalorder %s103, %s104
      %p113 = scmp.eq.s32.totalorder %s23, 0
      %p114 = por %p112, %p113
      %p115 = scmp.ne.s32.totalorder %s103, %s104
      %p116 = scmp.eq.s32.totalorder %s24, 1
      %p117 = por %p115, %p116
      %p119 = scmp.ne.s32.totalorder %s104, %s118
      %p120 = scmp.eq.s32.totalorder %s24, 0
      %p121 = por %p119, %p120
      %s123 = sadd.s32 %s122, 1
      %p126 = scmp.eq.s32.totalorder %s18, 1
      %p127 = scmp.ne.s32.totalorder %s122, %s124
      %p128 = scmp.eq.s32.totalorder %s18, 0
      %p129 = por %p127, %p128
      %p130 = scmp.ne.s32.totalorder %s122, %s124
      %p131 = scmp.eq.s32.totalorder %s23, 1
      %p132 = por %p130, %p131
      %p133 = scmp.ne.s32.totalorder %s124, %s125
      %p134 = scmp.eq.s32.totalorder %s23, 0
      %p135 = por %p133, %p134
      %p136 = scmp.ne.s32.totalorder %s124, %s125
      %p137 = scmp.eq.s32.totalorder %s24, 1
      %p138 = por %p136, %p137
      %p140 = scmp.ne.s32.totalorder %s125, %s139
      %p141 = scmp.eq.s32.totalorder %s24, 0
      %p142 = por %p140, %p141
      %s143 = ssub.s32 %s25, %s44
      %s144 = ssub.s32 %s26, %s40
      %s145 = sor.u32 %s143, %s144
      %p146 = scmp.eq.s32.totalorder %s145, 0
      %s148 = sadd.s32 %s147, 1
      %s149 = scalar_select %p146, %s147, %s148
      %p152 = pneg %p146
      %p153 = scmp.eq.s32.totalorder %s18, 1
      %p154 = por %p152, %p153
      %p155 = scmp.ne.s32.totalorder %s147, %s150
      %p156 = scmp.eq.s32.totalorder %s18, 0
      %p157 = por %p155, %p156
      %p158 = scmp.ne.s32.totalorder %s147, %s150
      %p159 = scmp.eq.s32.totalorder %s23, 1
      %p160 = por %p158, %p159
      %p161 = scmp.ne.s32.totalorder %s150, %s151
      %p162 = scmp.eq.s32.totalorder %s23, 0
      %p163 = por %p161, %p162
      %p164 = scmp.ne.s32.totalorder %s150, %s151
      %p165 = scmp.eq.s32.totalorder %s24, 1
      %p166 = por %p164, %p165
      %p168 = scmp.ne.s32.totalorder %s151, %s167
      %p169 = scmp.eq.s32.totalorder %s24, 0
      %p170 = por %p168, %p169
      %s171 = ssub.s32 %s25, %s44
      %s172 = ssub.s32 %s26, %s40
      %s173 = sor.u32 %s171, %s172
      %s174 = ssub.s32 %s27, %s36
      %s175 = sor.u32 %s173, %s174
      %p176 = scmp.eq.s32.totalorder %s175, 0
      %s178 = sadd.s32 %s177, 1
      %s179 = scalar_select %p176, %s177, %s178
      %p182 = pneg %p176
      %p183 = scmp.eq.s32.totalorder %s18, 1
      %p184 = por %p182, %p183
      %p185 = scmp.ne.s32.totalorder %s177, %s180
      %p186 = scmp.eq.s32.totalorder %s18, 0
      %p187 = por %p185, %p186
      %p188 = scmp.ne.s32.totalorder %s177, %s180
      %p189 = scmp.eq.s32.totalorder %s23, 1
      %p190 = por %p188, %p189
      %p191 = scmp.ne.s32.totalorder %s180, %s181
      %p192 = scmp.eq.s32.totalorder %s23, 0
      %p193 = por %p191, %p192
      %p194 = scmp.ne.s32.totalorder %s180, %s181
      %p195 = scmp.eq.s32.totalorder %s24, 1
      %p196 = por %p194, %p195
      %p198 = scmp.ne.s32.totalorder %s181, %s197
      %p199 = scmp.eq.s32.totalorder %s24, 0
      %p200 = por %p198, %p199
      %p201 = scmp.le.s32.totalorder 1, %s18
      %p202 = scmp.lt.s32.totalorder %s18, 3
      %p203 = pnand %p201, %p202
      %p204 = pneg %p203
      // Predicated region
      $region9: #{tpu_custom_call.1} parent=5 // pred_check
        _
      $region10: #{tpu_custom_call.1} parent=5 // pred_check_branch
        %206 = sbr.rel (%p203) target = $region12
      $region11: #{tpu_custom_call.1} parent=5 // pred_region
        %s207 = ssub.s32 %s18, 1
        // Predicated region
        $region13: #{tpu_custom_call.1} parent=11 // pred_check
          %p208 = pneg %p114
        $region14: #{tpu_custom_call.1} parent=11 // pred_check_branch
          %210 = sbr.rel (%p208) target = $region16
        $region15: #{tpu_custom_call.1} parent=11 // pred_region
          _
        $region16: #{tpu_custom_call.1} parent=11 // pred_fallthru
          _
        // Predicated region
        $region17: #{tpu_custom_call.1} parent=11 // pred_check
          %p211 = pneg %p135
        $region18: #{tpu_custom_call.1} parent=11 // pred_check_branch
          %213 = sbr.rel (%p211) target = $region20
        $region19: #{tpu_custom_call.1} parent=11 // pred_region
          _
        $region20: #{tpu_custom_call.1} parent=11 // pred_fallthru
          _
      $region12: #{tpu_custom_call.1} parent=5 // pred_fallthru
        _
      %p214 = scmp.lt.s32.totalorder %s18, 2
      // Predicated region
      $region21: #{tpu_custom_call.1} parent=5 // pred_check
        %p215 = pneg %p214
      $region22: #{tpu_custom_call.1} parent=5 // pred_check_branch
        %217 = sbr.rel (%p215) target = $region24
      $region23: #{tpu_custom_call.1} parent=5 // pred_region
        // Predicated region
        $region25: #{tpu_custom_call.1} parent=23 // pred_check
          %p218 = pneg %p59
        $region26: #{tpu_custom_call.1} parent=23 // pred_check_branch
          %220 = sbr.rel (%p218) target = $region28
        $region27: #{tpu_custom_call.1} parent=23 // pred_region
          %p221 = scmp.lt.s32.totalorder %s25, 1
          %s222 = scalar_select %p221, %s25, 1
          %p223 = scmp.lt.s32.totalorder %s26, 0
          %s224 = scalar_select %p223, %s26, 0
          %s225 = sadd.s32 %s224, %s222
          %s226 = smul.addr %s225, 8
          %s227 = scalar_lea.vmem %s0, %s226
        $region28: #{tpu_custom_call.1} parent=23 // pred_fallthru
          _
        // Predicated region
        $region29: #{tpu_custom_call.1} parent=23 // pred_check
          %p228 = pneg %p87
        $region30: #{tpu_custom_call.1} parent=23 // pred_check_branch
          %230 = sbr.rel (%p228) target = $region32
        $region31: #{tpu_custom_call.1} parent=23 // pred_region
          %s231 = smul.u32 16, %s27
          %p232 = scmp.lt.s32.totalorder %s25, 1
          %s233 = scalar_select %p232, %s25, 1
          %p234 = scmp.lt.s32.totalorder %s231, 15
          %s235 = scalar_select %p234, %s231, 15
          %s236 = smul.addr %s233, 16
          %s237 = sadd.s32 %s235, %s236
          %s238 = smul.addr %s237, 8
          %s239 = scalar_lea.vmem %s1, %s238
          %s240 = smul.u32 16, %s27
        $region32: #{tpu_custom_call.1} parent=23 // pred_fallthru
          _
      $region24: #{tpu_custom_call.1} parent=5 // pred_fallthru
        _
      %p241 = scmp.le.s32.totalorder 1, %s18
      %p242 = scmp.lt.s32.totalorder %s18, 3
      %p243 = pnand %p241, %p242
      %p244 = pneg %p243
      // Predicated region
      $region33: #{tpu_custom_call.1} parent=5 // pred_check
        _
      $region34: #{tpu_custom_call.1} parent=5 // pred_check_branch
        %246 = sbr.rel (%p243) target = $region36
      $region35: #{tpu_custom_call.1} parent=5 // pred_region
        %s247 = ssub.s32 %s18, 1
        %p248 = scmp.lt.s32.totalorder %s28, 1
        %s249 = scalar_select %p248, %s28, 1
        %p250 = scmp.lt.s32.totalorder %s29, 0
        %s251 = scalar_select %p250, %s29, 0
        %s252 = sadd.s32 %s251, %s249
        %s253 = smul.addr %s252, 8
        %s254 = scalar_lea.vmem %s0, %s253
        %p255 = pneg %p65
        %p256 = pneg %p62
        %s257 = smul.u32 16, %s30
        %p258 = scmp.lt.s32.totalorder %s28, 1
        %s259 = scalar_select %p258, %s28, 1
        %p260 = scmp.lt.s32.totalorder %s257, 15
        %s261 = scalar_select %p260, %s257, 15
        %s262 = smul.addr %s259, 16
        %s263 = sadd.s32 %s261, %s262
        %s264 = smul.addr %s263, 8
        %s265 = scalar_lea.vmem %s1, %s264
        %p266 = pneg %p93
        %p267 = pneg %p90
        %p268 = pneg %p114
        %p269 = pneg %p111
        %p270 = pneg %p135
        %p271 = pneg %p132
        %p272 = pneg %p163
        %p273 = pneg %p160
        %s274 = sand.u32 %s150, 1
        %s275 = scalar_lea.sflag [#allocation8], %s274
        %s276 = sand.u32 %s150, 1
        %s277 = smul.addr %s276, 8
        %s278 = scalar_lea.vmem [#allocation7], %s277
        %p279 = pneg %p193
        %p280 = pneg %p190
        %s281 = sand.u32 %s180, 1
        %s282 = scalar_lea.sflag [#allocation10], %s281
        %s283 = sand.u32 %s180, 1
        %s284 = smul.addr %s283, 8
        %s285 = scalar_lea.vmem [#allocation9], %s284
        %p286 = scmp.lt.s32.totalorder %s28, 1
        %s287 = scalar_select %p286, %s28, 1
        %p288 = scmp.lt.s32.totalorder %s29, 0
        %s289 = scalar_select %p288, %s29, 0
        %s290 = sadd.s32 %s289, %s287
        %s291 = smul.addr %s290, 8
        %s292 = scalar_lea.vmem %s0, %s291
        %s293 = smul.u32 16, %s30
        %p294 = scmp.lt.s32.totalorder %s28, 1
        %s295 = scalar_select %p294, %s28, 1
        %p296 = scmp.lt.s32.totalorder %s293, 15
        %s297 = scalar_select %p296, %s293, 15
        %s298 = smul.addr %s295, 16
        %s299 = sadd.s32 %s297, %s298
        %s300 = smul.addr %s299, 8
        %s301 = scalar_lea.vmem %s1, %s300
        %s302 = smul.u32 16, %s30
        %p304 = scmp.eq.s32.totalorder %s30, 0
        // Predicated region
        $region37: #{tpu_custom_call.1} parent=35 // pred_check
          %p305 = pneg %p304
        $region38: #{tpu_custom_call.1} parent=35 // pred_check_branch
          %307 = sbr.rel (%p305) target = $region40
        $region39: #{tpu_custom_call.1} parent=35 // pred_region
          %v308 = vld [vmem:[%s292] sm:$0xff]
          %v309 = vld [vmem:[%s2] sm:$0xff]
          %v310 = vld [vmem:[%s2 + $0x8] sm:$0xff]
          %v311 = vld [vmem:[%s2 + $0x10] sm:$0xff]
          %v312 = vld [vmem:[%s2 + $0x18] sm:$0xff]
          %v313 = vld [vmem:[%s2 + $0x20] sm:$0xff]
          %v314 = vld [vmem:[%s2 + $0x28] sm:$0xff]
          %v315 = vld [vmem:[%s2 + $0x30] sm:$0xff]
          %v316 = vld [vmem:[%s2 + $0x38] sm:$0xff]
          %vm317 = vcmask 523264
          %v319 = vsel %vm317, %v308, 0
          %321 = vmatprep.subr.mxu0 0.0
          %322 = vmatpush1.msra.mxu0 %v309
          %323 = vmatprep.subr.mxu0 0.0
          %324 = vmatpush1.msra.mxu0 %v310
          %325 = vmatprep.subr.mxu0 0.0
          %326 = vmatpush1.msra.mxu0 %v311
          %327 = vmatprep.subr.mxu0 0.0
          %328 = vmatpush1.msra.mxu0 %v312
          %329 = vmatprep.subr.mxu0 0.0
          %330 = vmatpush1.msra.mxu0 %v313
          %331 = vmatprep.subr.mxu0 0.0
          %332 = vmatpush1.msra.mxu0 %v314
          %333 = vmatprep.subr.mxu0 0.0
          %334 = vmatpush1.msra.mxu0 %v315
          %335 = vmatprep.subr.mxu0 0.0
          %336 = vmatpush1.msra.mxu0 %v316
          %337 = vmatprep.subr.mxu0 0.0
          %338 = vmatpush1.msra.mxu0 0.0
          %339 = vmatprep.subr.mxu0 0.0
          %340 = vmatpush1.msra.mxu0 0.0
          %341 = vmatprep.subr.mxu0 0.0
          %342 = vmatpush1.msra.mxu0 0.0
          %343 = vmatprep.subr.mxu0 0.0
          %344 = vmatpush1.msra.mxu0 0.0
          %345 = vmatprep.subr.mxu0 0.0
          %346 = vmatpush1.msra.mxu0 0.0
          %347 = vmatprep.subr.mxu0 0.0
          %348 = vmatpush1.msra.mxu0 0.0
          %349 = vmatprep.subr.mxu0 0.0
          %350 = vmatpush1.msra.mxu0 0.0
          %351 = vmatprep.subr.mxu0 0.0
          %352 = vmatpush1.msra.mxu0 0.0
          %353 = vmatprep.subr.mxu0 0.0
          %354 = vmatpush1.msra.mxu0 0.0
          %355 = vmatprep.subr.mxu0 0.0
          %356 = vmatpush1.msra.mxu0 0.0
          %357 = vmatprep.subr.mxu0 0.0
          %358 = vmatpush1.msra.mxu0 0.0
          %359 = vmatprep.subr.mxu0 0.0
          %360 = vmatpush1.msra.mxu0 0.0
          %361 = vmatprep.subr.mxu0 0.0
          %362 = vmatpush1.msra.mxu0 0.0
          %363 = vmatprep.subr.mxu0 0.0
          %364 = vmatpush1.msra.mxu0 0.0
          %365 = vmatprep.subr.mxu0 0.0
          %366 = vmatpush1.msra.mxu0 0.0
          %367 = vmatprep.subr.mxu0 0.0
          %368 = vmatpush1.msra.mxu0 0.0
          %369 = vmatprep.subr.mxu0 0.0
          %370 = vmatpush1.msra.mxu0 0.0
          %371 = vmatprep.subr.mxu0 0.0
          %372 = vmatpush1.msra.mxu0 0.0
          %373 = vmatprep.subr.mxu0 0.0
          %374 = vmatpush1.msra.mxu0 0.0
          %375 = vmatprep.subr.mxu0 0.0
          %376 = vmatpush1.msra.mxu0 0.0
          %377 = vmatprep.subr.mxu0 0.0
          %378 = vmatpush1.msra.mxu0 0.0
          %379 = vmatprep.subr.mxu0 0.0
          %380 = vmatpush1.msra.mxu0 0.0
          %381 = vmatprep.subr.mxu0 0.0
          %382 = vmatpush1.msra.mxu0 0.0
          %383 = vmatprep.subr.mxu0 0.0
          %384 = vmatpush1.msra.mxu0 0.0
          %385 = vmatprep.mubr.f32.mxu0 0.0
          %386 = vmatmul.mubr.f32.gmra.mrb[0].mxu0 %v319
          %v387 = vpop.f32.mrb[0].mxu0
          %v388 = vadd.f32 0.0, %v387
          %v389 = vpop.f32.mrb[0].mxu0
          %390 = vdwg.mxu0
          %vm391 = vcmask 261120
          %392 = vst.msk [vmem:[#allocation2] sm:$0xff] %vm391, %v388
          %v393 = vld [vmem:[%s3] sm:$0x1]
          %v395 = vlaneseq
          %v396 = vshrl.u32 %v395, 7
          %v397 = vsub.s32 0, %v396
          %v398 = vrot.slane %v393, %v397
          %v400 = vmul.f32 %v308, %v398
          %v401 = vsel %vm317, %v400, 0.0
          %402 = vadd.xlane.f32.xlu0 %v401
          %v403 = vpop.xlane.xlu0 %402
          %vm404 = vcmask 7168
          %405 = vst.msk [vmem:[#allocation3] sm:$0xff] %vm404, %v403
          %406 = vst.msk [vmem:[#allocation4] sm:$0xff] %vm404, -inf
          %407 = vst.msk [vmem:[#allocation5] sm:$0xff] %vm404, 0.0
          %408 = vst.msk [vmem:[#allocation6] sm:$0xff] %vm391, 0.0
        $region40: #{tpu_custom_call.1} parent=35 // pred_fallthru
          _
        %v409 = vld [vmem:[%s301] sm:$0xff]
        %v410 = vld [vmem:[%s301 + $0x8] sm:$0xff]
        %v411 = vld [vmem:[%s301 + $0x10] sm:$0xff]
        %v412 = vld [vmem:[%s301 + $0x18] sm:$0xff]
        %v413 = vld [vmem:[%s301 + $0x20] sm:$0xff]
        %v414 = vld [vmem:[%s301 + $0x28] sm:$0xff]
        %v415 = vld [vmem:[%s301 + $0x30] sm:$0xff]
        %v416 = vld [vmem:[%s301 + $0x38] sm:$0xff]
        %v417 = vld [vmem:[%s301 + $0x40] sm:$0xff]
        %v418 = vld [vmem:[%s301 + $0x48] sm:$0xff]
        %v419 = vld [vmem:[%s301 + $0x50] sm:$0xff]
        %v420 = vld [vmem:[%s301 + $0x58] sm:$0xff]
        %v421 = vld [vmem:[%s301 + $0x60] sm:$0xff]
        %v422 = vld [vmem:[%s301 + $0x68] sm:$0xff]
        %v423 = vld [vmem:[%s301 + $0x70] sm:$0xff]
        %v424 = vld [vmem:[%s301 + $0x78] sm:$0xff]
        %v425 = vld [vmem:[#allocation2] sm:$0xff]
        %v426 = vld [vmem:[#allocation3] sm:$0xff]
        %428 = vset.pattern.permute.xlu0 0
        %429 = vperm.xlu0 %428, %v426
        %v430 = vpop.permute.xlu0 %429
        %vm432 = vcmask 261120
        %v434 = vsel %vm432, %v425, 0
        %v437 = vsel %vm432, %v409, 0
        %v440 = vsel %vm432, %v410, 0
        %v443 = vsel %vm432, %v411, 0
        %v446 = vsel %vm432, %v412, 0
        %v449 = vsel %vm432, %v413, 0
        %v452 = vsel %vm432, %v414, 0
        %v455 = vsel %vm432, %v415, 0
        %v458 = vsel %vm432, %v416, 0
        %v461 = vsel %vm432, %v417, 0
        %v464 = vsel %vm432, %v418, 0
        %v467 = vsel %vm432, %v419, 0
        %v470 = vsel %vm432, %v420, 0
        %v473 = vsel %vm432, %v421, 0
        %v476 = vsel %vm432, %v422, 0
        %v479 = vsel %vm432, %v423, 0
        %v482 = vsel %vm432, %v424, 0
        %484 = vmatprep.subr.mxu0 0.0
        %485 = vmatpush1.xpose.msra.mxu0 %v437
        %486 = vmatprep.subr.mxu0 0.0
        %487 = vmatpush1.xpose.msra.mxu0 %v440
        %488 = vmatprep.subr.mxu0 0.0
        %489 = vmatpush1.xpose.msra.mxu0 %v443
        %490 = vmatprep.subr.mxu0 0.0
        %491 = vmatpush1.xpose.msra.mxu0 %v446
        %492 = vmatprep.subr.mxu0 0.0
        %493 = vmatpush1.xpose.msra.mxu0 %v449
        %494 = vmatprep.subr.mxu0 0.0
        %495 = vmatpush1.xpose.msra.mxu0 %v452
        %496 = vmatprep.subr.mxu0 0.0
        %497 = vmatpush1.xpose.msra.mxu0 %v455
        %498 = vmatprep.subr.mxu0 0.0
        %499 = vmatpush1.xpose.msra.mxu0 %v458
        %500 = vmatprep.subr.mxu0 0.0
        %501 = vmatpush1.xpose.msra.mxu0 %v461
        %502 = vmatprep.subr.mxu0 0.0
        %503 = vmatpush1.xpose.msra.mxu0 %v464
        %504 = vmatprep.subr.mxu0 0.0
        %505 = vmatpush1.xpose.msra.mxu0 %v467
        %506 = vmatprep.subr.mxu0 0.0
        %507 = vmatpush1.xpose.msra.mxu0 %v470
        %508 = vmatprep.subr.mxu0 0.0
        %509 = vmatpush1.xpose.msra.mxu0 %v473
        %510 = vmatprep.subr.mxu0 0.0
        %511 = vmatpush1.xpose.msra.mxu0 %v476
        %512 = vmatprep.subr.mxu0 0.0
        %513 = vmatpush1.xpose.msra.mxu0 %v479
        %514 = vmatprep.subr.mxu0 0.0
        %515 = vmatpush1.xpose.msra.mxu0 %v482
        %516 = vmatprep.subr.mxu0 0.0
        %517 = vmatpush1.xpose.msra.mxu0 0.0
        %518 = vmatprep.subr.mxu0 0.0
        %519 = vmatpush1.xpose.msra.mxu0 0.0
        %520 = vmatprep.subr.mxu0 0.0
        %521 = vmatpush1.xpose.msra.mxu0 0.0
        %522 = vmatprep.subr.mxu0 0.0
        %523 = vmatpush1.xpose.msra.mxu0 0.0
        %524 = vmatprep.subr.mxu0 0.0
        %525 = vmatpush1.xpose.msra.mxu0 0.0
        %526 = vmatprep.subr.mxu0 0.0
        %527 = vmatpush1.xpose.msra.mxu0 0.0
        %528 = vmatprep.subr.mxu0 0.0
        %529 = vmatpush1.xpose.msra.mxu0 0.0
        %530 = vmatprep.subr.mxu0 0.0
        %531 = vmatpush1.xpose.msra.mxu0 0.0
        %532 = vmatprep.subr.mxu0 0.0
        %533 = vmatpush1.xpose.msra.mxu0 0.0
        %534 = vmatprep.subr.mxu0 0.0
        %535 = vmatpush1.xpose.msra.mxu0 0.0
        %536 = vmatprep.subr.mxu0 0.0
        %537 = vmatpush1.xpose.msra.mxu0 0.0
        %538 = vmatprep.subr.mxu0 0.0
        %539 = vmatpush1.xpose.msra.mxu0 0.0
        %540 = vmatprep.subr.mxu0 0.0
        %541 = vmatpush1.xpose.msra.mxu0 0.0
        %542 = vmatprep.subr.mxu0 0.0
        %543 = vmatpush1.xpose.msra.mxu0 0.0
        %544 = vmatprep.subr.mxu0 0.0
        %545 = vmatpush1.xpose.msra.mxu0 0.0
        %546 = vmatprep.subr.mxu0 0.0
        %547 = vmatpush1.xpose.msra.mxu0 0.0
        %548 = vmatprep.mubr.f32.mxu0 0.0
        %549 = vmatmul.mubr.f32.gmra.mrb[0].mxu0 %v434
        %v550 = vpop.f32.mrb[0].mxu0
        %v551 = vadd.f32 %v430, %v550
        %v552 = vpop.f32.mrb[0].mxu0
        %553 = vdwg.mxu0
        %554 = vst [vmem:[%s285] sm:$0xff] %v551
        %v555 = vpack.c.bf16 %v410, %v409
        %v556 = vpack.c.bf16 %v412, %v411
        %v557 = vpack.c.bf16 %v414, %v413
        %v558 = vpack.c.bf16 %v416, %v415
        %v559 = vpack.c.bf16 %v418, %v417
        %v560 = vpack.c.bf16 %v420, %v419
        %v561 = vpack.c.bf16 %v422, %v421
        %v562 = vpack.c.bf16 %v424, %v423
        %s563 = sadd.s32 %s30, 1
        %s564 = smul.u32 %s563, 128
        %p565 = scmp.gt.s32.totalorder %s564, 8
        // Predicated region
        $region41: #{tpu_custom_call.1} parent=35 // pred_check
          %p566 = pneg %p565
        $region42: #{tpu_custom_call.1} parent=35 // pred_check_branch
          %568 = sbr.rel (%p566) target = $region44
        $region43: #{tpu_custom_call.1} parent=35 // pred_region
          %v569 = vmul.f32 %v551, 0.125
          %s570 = smul.u32 %s30, 128
          %v571 = vlaneseq
          %v572 = vand.u32 %v571, 127
          %v573 = vstv %s570
          %v574 = vadd.s32 %v573, %v572
          %vm575 = vcmp.ge.s32.totalorder %v574, 8
          %v576 = vsel %vm575, -inf, %v569
          %v577 = vld [vmem:[#allocation4] sm:$0xff]
          %578 = vmax.xlane.f32.xlu0 %v576
          %v579 = vpop.xlane.xlu0 %578
          %v580 = vmax.f32 %v577, %v579
          %vm581 = vcmp.eq.f32.partialorder %v580, -inf
          %v582 = vsub.f32 %v577, %v580
          %v583 = vmul.f32 %v582, 1.442695
          %v584 = vpow.pop %v583
          %v585 = vsel %vm581, 0.0, %v584
          %vm586 = vcmp.eq.f32.partialorder %v576, -inf
          %588 = vset.pattern.permute.xlu0 0
          %589 = vperm.xlu0 %588, %v580
          %v590 = vpop.permute.xlu0 %589
          %v592 = vsub.f32 %v576, %v590
          %v593 = vmul.f32 %v592, 1.442695
          %v594 = vpow.pop %v593
          %v595 = vsel %vm586, 0.0, %v594
          %v596 = vld [vmem:[#allocation5] sm:$0xff]
          %v597 = vmul.f32 %v585, %v596
          %598 = vadd.xlane.f32.xlu0 %v595
          %v599 = vpop.xlane.xlu0 %598
          %v600 = vadd.f32 %v597, %v599
          %vm601 = vcmask 7168
          %602 = vst.msk [vmem:[#allocation5] sm:$0xff] %vm601, %v600
          %v603 = vld [vmem:[#allocation6] sm:$0xff]
          %605 = vset.pattern.permute.xlu0 0
          %606 = vperm.xlu0 %605, %v585
          %v607 = vpop.permute.xlu0 %606
          %v609 = vmul.f32 %v607, %v603
          %v610 = vpack.c.bf16 %v595, %v595
          %611 = vmatprep.subr.bf16.mxu0 0
          %612 = vmatpush1.bf16.msra.mxu0 %v555
          %613 = vmatprep.subr.bf16.mxu0 0
          %614 = vmatpush1.bf16.msra.mxu0 %v556
          %615 = vmatprep.subr.bf16.mxu0 0
          %616 = vmatpush1.bf16.msra.mxu0 %v557
          %617 = vmatprep.subr.bf16.mxu0 0
          %618 = vmatpush1.bf16.msra.mxu0 %v558
          %619 = vmatprep.subr.bf16.mxu0 0
          %620 = vmatpush1.bf16.msra.mxu0 %v559
          %621 = vmatprep.subr.bf16.mxu0 0
          %622 = vmatpush1.bf16.msra.mxu0 %v560
          %623 = vmatprep.subr.bf16.mxu0 0
          %624 = vmatpush1.bf16.msra.mxu0 %v561
          %625 = vmatprep.subr.bf16.mxu0 0
          %626 = vmatpush1.bf16.msra.mxu0 %v562
          %627 = vmatprep.subr.bf16.mxu0 0
          %628 = vmatpush1.bf16.msra.mxu0 0
          %629 = vmatprep.subr.bf16.mxu0 0
          %630 = vmatpush1.bf16.msra.mxu0 0
          %631 = vmatprep.subr.bf16.mxu0 0
          %632 = vmatpush1.bf16.msra.mxu0 0
          %633 = vmatprep.subr.bf16.mxu0 0
          %634 = vmatpush1.bf16.msra.mxu0 0
          %635 = vmatprep.subr.bf16.mxu0 0
          %636 = vmatpush1.bf16.msra.mxu0 0
          %637 = vmatprep.subr.bf16.mxu0 0
          %638 = vmatpush1.bf16.msra.mxu0 0
          %639 = vmatprep.subr.bf16.mxu0 0
          %640 = vmatpush1.bf16.msra.mxu0 0
          %641 = vmatprep.subr.bf16.mxu0 0
          %642 = vmatpush1.bf16.msra.mxu0 0
          %643 = vmatprep.mubr.bf16.mxu0 0
          %644 = vmatmul.mubr.bf16.gmra.mrb[0].mxu0 %v610
          %v645 = vpop.f32.mrb[0].mxu0
          %v646 = vadd.f32 0.0, %v645
          %v647 = vpop.f32.mrb[0].mxu0
          %v648 = vpop.f32.mrb[0].mxu0
          %v649 = vpop.f32.mrb[0].mxu0
          %650 = vdwg.mxu0
          %v651 = vadd.f32 %v609, %v646
          %652 = vst.msk [vmem:[#allocation6] sm:$0xff] %vm432, %v651
          %653 = vst.msk [vmem:[#allocation4] sm:$0xff] %vm601, %v580
        $region44: #{tpu_custom_call.1} parent=35 // pred_fallthru
          _
        %p654 = scmp.le.s32.totalorder %s564, 8
        // Predicated region
        $region45: #{tpu_custom_call.1} parent=35 // pred_check
          %p655 = pneg %p654
        $region46: #{tpu_custom_call.1} parent=35 // pred_check_branch
          %657 = sbr.rel (%p655) target = $region48
        $region47: #{tpu_custom_call.1} parent=35 // pred_region
          %v658 = vmul.f32 %v551, 0.125
          %v659 = vld [vmem:[#allocation4] sm:$0xff]
          %660 = vmax.xlane.f32.xlu0 %v658
          %v661 = vpop.xlane.xlu0 %660
          %v662 = vmax.f32 %v659, %v661
          %v663 = vsub.f32 %v659, %v662
          %v664 = vmul.f32 %v663, 1.442695
          %v665 = vpow.pop %v664
          %667 = vset.pattern.permute.xlu0 0
          %668 = vperm.xlu0 %667, %v662
          %v669 = vpop.permute.xlu0 %668
          %v671 = vsub.f32 %v658, %v669
          %v672 = vmul.f32 %v671, 1.442695
          %v673 = vpow.pop %v672
          %v674 = vld [vmem:[#allocation5] sm:$0xff]
          %v675 = vmul.f32 %v665, %v674
          %676 = vadd.xlane.f32.xlu0 %v673
          %v677 = vpop.xlane.xlu0 %676
          %v678 = vadd.f32 %v675, %v677
          %vm679 = vcmask 7168
          %680 = vst.msk [vmem:[#allocation5] sm:$0xff] %vm679, %v678
          %v681 = vld [vmem:[#allocation6] sm:$0xff]
          %683 = vset.pattern.permute.xlu0 0
          %684 = vperm.xlu0 %683, %v665
          %v685 = vpop.permute.xlu0 %684
          %v687 = vmul.f32 %v685, %v681
          %v688 = vpack.c.bf16 %v673, %v673
          %689 = vmatprep.subr.bf16.mxu0 0
          %690 = vmatpush1.bf16.msra.mxu0 %v555
          %691 = vmatprep.subr.bf16.mxu0 0
          %692 = vmatpush1.bf16.msra.mxu0 %v556
          %693 = vmatprep.subr.bf16.mxu0 0
          %694 = vmatpush1.bf16.msra.mxu0 %v557
          %695 = vmatprep.subr.bf16.mxu0 0
          %696 = vmatpush1.bf16.msra.mxu0 %v558
          %697 = vmatprep.subr.bf16.mxu0 0
          %698 = vmatpush1.bf16.msra.mxu0 %v559
          %699 = vmatprep.subr.bf16.mxu0 0
          %700 = vmatpush1.bf16.msra.mxu0 %v560
          %701 = vmatprep.subr.bf16.mxu0 0
          %702 = vmatpush1.bf16.msra.mxu0 %v561
          %703 = vmatprep.subr.bf16.mxu0 0
          %704 = vmatpush1.bf16.msra.mxu0 %v562
          %705 = vmatprep.subr.bf16.mxu0 0
          %706 = vmatpush1.bf16.msra.mxu0 0
          %707 = vmatprep.subr.bf16.mxu0 0
          %708 = vmatpush1.bf16.msra.mxu0 0
          %709 = vmatprep.subr.bf16.mxu0 0
          %710 = vmatpush1.bf16.msra.mxu0 0
          %711 = vmatprep.subr.bf16.mxu0 0
          %712 = vmatpush1.bf16.msra.mxu0 0
          %713 = vmatprep.subr.bf16.mxu0 0
          %714 = vmatpush1.bf16.msra.mxu0 0
          %715 = vmatprep.subr.bf16.mxu0 0
          %716 = vmatpush1.bf16.msra.mxu0 0
          %717 = vmatprep.subr.bf16.mxu0 0
          %718 = vmatpush1.bf16.msra.mxu0 0
          %719 = vmatprep.subr.bf16.mxu0 0
          %720 = vmatpush1.bf16.msra.mxu0 0
          %721 = vmatprep.mubr.bf16.mxu0 0
          %722 = vmatmul.mubr.bf16.gmra.mrb[0].mxu0 %v688
          %v723 = vpop.f32.mrb[0].mxu0
          %v724 = vadd.f32 0.0, %v723
          %v725 = vpop.f32.mrb[0].mxu0
          %v726 = vpop.f32.mrb[0].mxu0
          %v727 = vpop.f32.mrb[0].mxu0
          %728 = vdwg.mxu0
          %v729 = vadd.f32 %v687, %v724
          %730 = vst.msk [vmem:[#allocation6] sm:$0xff] %vm432, %v729
          %731 = vst.msk [vmem:[#allocation4] sm:$0xff] %vm679, %v662
        $region48: #{tpu_custom_call.1} parent=35 // pred_fallthru
          _
        // Predicated region
        $region49: #{tpu_custom_call.1} parent=35 // pred_check
          %p732 = pneg %p304
        $region50: #{tpu_custom_call.1} parent=35 // pred_check_branch
          %734 = sbr.rel (%p732) target = $region52
        $region51: #{tpu_custom_call.1} parent=35 // pred_region
          %v735 = vld [vmem:[#allocation5] sm:$0xff]
          %v736 = vrcp.pop %v735
          %v737 = vld [vmem:[#allocation6] sm:$0xff]
          %739 = vset.pattern.permute.xlu0 0
          %740 = vperm.xlu0 %739, %v736
          %v741 = vpop.permute.xlu0 %740
          %v743 = vmul.f32 %v737, %v741
          %744 = vst.msk [vmem:[%s278] sm:$0xff] %vm432, %v743
        $region52: #{tpu_custom_call.1} parent=35 // pred_fallthru
          _
        %s745 = sand.u32 %s150, 1
        %s746 = scalar_lea.sflag [#allocation8], %s745
        %s747 = sand.u32 %s150, 1
        %s748 = smul.addr %s747, 8
        %s749 = scalar_lea.vmem [#allocation7], %s748
        %s750 = sand.u32 %s180, 1
        %s751 = scalar_lea.sflag [#allocation10], %s750
        %s752 = sand.u32 %s180, 1
        %s753 = smul.addr %s752, 8
        %s754 = scalar_lea.vmem [#allocation9], %s753
        // Predicated region
        $region53: #{tpu_custom_call.1} parent=35 // pred_check
          %p755 = pneg %p160
        $region54: #{tpu_custom_call.1} parent=35 // pred_check_branch
          %757 = sbr.rel (%p755) target = $region56
        $region55: #{tpu_custom_call.1} parent=35 // pred_region
          %s759 = ssub.s32 128, 128
          %760 = vsyncadd %s746, %s759
          %s761 = sadd.s32 %s29, %s28
          %s762 = smul.addr %s761, 128
          %s763 = scalar_lea.hbm %s4, %s762
          %s765 = sshll.u32 %s749, 4
          %s766 = int_to_ptr.vmem [resolvable:$true] %s765
          %768 = dma.vmem_to_hbm [thread:$0]  %s766, 128, %s763, %s746
        $region56: #{tpu_custom_call.1} parent=35 // pred_fallthru
          _
        // Predicated region
        $region57: #{tpu_custom_call.1} parent=35 // pred_check
          %p769 = pneg %p190
        $region58: #{tpu_custom_call.1} parent=35 // pred_check_branch
          %771 = sbr.rel (%p769) target = $region60
        $region59: #{tpu_custom_call.1} parent=35 // pred_region
          %s773 = ssub.s32 128, 128
          %774 = vsyncadd %s751, %s773
          %s775 = sadd.s32 %s30, %s29
          %s776 = sadd.s32 %s775, %s28
          %s777 = smul.addr %s776, 128
          %s778 = scalar_lea.hbm %s5, %s777
          %s780 = sshll.u32 %s754, 4
          %s781 = int_to_ptr.vmem [resolvable:$true] %s780
          %783 = dma.vmem_to_hbm [thread:$0]  %s781, 128, %s778, %s751
        $region60: #{tpu_custom_call.1} parent=35 // pred_fallthru
          _
      $region36: #{tpu_custom_call.1} parent=5 // pred_fallthru
        _
      %p784 = scmp.le.s32.totalorder 2, %s18
      // Predicated region
      $region61: #{tpu_custom_call.1} parent=5 // pred_check
        %p785 = pneg %p784
      $region62: #{tpu_custom_call.1} parent=5 // pred_check_branch
        %787 = sbr.rel (%p785) target = $region64
      $region63: #{tpu_custom_call.1} parent=5 // pred_region
        %s788 = ssub.s32 %s18, 2
        // Predicated region
        $region65: #{tpu_custom_call.1} parent=63 // pred_check
          %p789 = pneg %p166
        $region66: #{tpu_custom_call.1} parent=63 // pred_check_branch
          %791 = sbr.rel (%p789) target = $region68
        $region67: #{tpu_custom_call.1} parent=63 // pred_region
          %s792 = sand.u32 %s151, 1
          %s793 = scalar_lea.sflag [#allocation8], %s792
          %s794 = sand.u32 %s151, 1
          %s795 = smul.addr %s794, 8
          %s796 = scalar_lea.vmem [#allocation7], %s795
          %797 = dma.done %s793, 128
        $region68: #{tpu_custom_call.1} parent=63 // pred_fallthru
          _
        // Predicated region
        $region69: #{tpu_custom_call.1} parent=63 // pred_check
          %p798 = pneg %p196
        $region70: #{tpu_custom_call.1} parent=63 // pred_check_branch
          %800 = sbr.rel (%p798) target = $region72
        $region71: #{tpu_custom_call.1} parent=63 // pred_region
          %s801 = sand.u32 %s181, 1
          %s802 = scalar_lea.sflag [#allocation10], %s801
          %s803 = sand.u32 %s181, 1
          %s804 = smul.addr %s803, 8
          %s805 = scalar_lea.vmem [#allocation9], %s804
          %806 = dma.done %s802, 128
        $region72: #{tpu_custom_call.1} parent=63 // pred_fallthru
          _
      $region64: #{tpu_custom_call.1} parent=5 // pred_fallthru
        _
    $region6: #{tpu_custom_call.1} parent=1 // loop_footer
      %s22 = sadd.s32 1, %s18
    $region7: #{tpu_custom_call.1} parent=1 // loop_footer_branch
      %17 = sbr.rel target = $region3
    $region8: #{tpu_custom_call.1} parent=1 // loop_exit
      _
    %807 = vsyncpa [#allocation8], 1
    %s808 = scalar_lea.sflag [#allocation8], 1
    %809 = vsyncpa %s808, 1
    %810 = vsyncpa [#allocation10], 1
    %s811 = scalar_lea.sflag [#allocation10], 1
    %812 = vsyncpa %s811, 1

</llo_original>
